<compile_context>
chip_gen: v7x
topology: tpu7x:2x2x1
jax: 0.10.0
libtpu: 0.0.40
codegen_flags: <defaults>
</compile_context>

<pallas_src>
import functools

import numpy as np

import jax
import jax.numpy as jnp
from jax import lax
from jax.experimental import pallas as pl
from jax.experimental.pallas import tpu as pltpu

GAMMA = 0.99
LAMBDA = 0.95

_LANE_MULTIPLE = 128
_TIME_CHUNK_MAX = 64            # rows per time-grid block (multiple of 8 and 16)
_VMEM_LIMIT = 16 << 20          # scoped-VMEM limit; per-step working set ~2 MiB
_RESCALE_PALLAS_MIN = 8192      # below this, let XLA fuse the affine rescale


# ----------------------------------------------------------------------------
# Padding / tiling helpers
# ----------------------------------------------------------------------------
def _round_up(x, m):
    return -(-x // m) * m


def _pick_lane_tile(n):
    """Lane (env-axis) tile, chosen BEFORE padding (n_pad rounds up to it).
    Keep >=2 env tiles once N >= 256 so v7x can shard the parallel grid axis
    across both TensorCores; otherwise prefer wider tiles so each dependent
    recurrence step works on 2-4 vregs."""
    if n <= 256:
        return 128
    for cand in (512, 256):
        if _round_up(n, cand) // cand >= 2:
            return cand
    return 128


def _time_tiling(t, time_blk):
    """Return (t_chunk, t_pad): rows per time-grid block and padded extent."""
    t_chunk = _round_up(t, time_blk) if t <= _TIME_CHUNK_MAX else _TIME_CHUNK_MAX
    return t_chunk, _round_up(t, t_chunk)


def _pad2d(x, t_pad, n_pad):
    T, N = x.shape
    if (T, N) == (t_pad, n_pad):
        return x
    return jnp.pad(x, ((0, t_pad - T), (0, n_pad - N)))


def _maybe_crop(x, T, N):
    return x if x.shape == (T, N) else x[:T, :N]


def _compiler_params():
    return pltpu.CompilerParams(
        dimension_semantics=("parallel", "arbitrary"),   # (env tiles, time)
        vmem_limit_bytes=_VMEM_LIMIT)


# ----------------------------------------------------------------------------
# Kernel 1: discounted returns (Agent.calc_returns)
#   running = r[t] + (1 - done[t]) * gamma * running     (t = T-1 .. 0)
# ----------------------------------------------------------------------------
def _returns_kernel(r_ref, d_ref, out_ref, carry_ref, *, gamma, time_blk):
    @pl.when(pl.program_id(1) == 0)            # first (latest-time) chunk
    def _init():
        carry_ref[...] = jnp.zeros_like(carry_ref)

    t_chunk, _ = r_ref.shape
    nsub = t_chunk // time_blk

    def body(i, running):
        b = nsub - 1 - i
        t0 = pl.multiple_of(b * time_blk, time_blk)
        r_blk = r_ref[pl.ds(t0, time_blk), :]
        # Carry-independent math hoisted out of the serial chain (full vregs).
        coef = gamma * (1.0 - d_ref[pl.ds(t0, time_blk), :])
        rows = [None] * time_blk
        for s in range(time_blk - 1, -1, -1):   # statically unrolled
            running = r_blk[s:s + 1, :] + coef[s:s + 1, :] * running
            rows[s] = running
        out_ref[pl.ds(t0, time_blk), :] = jnp.concatenate(rows, axis=0)
        return running

    carry_ref[...] = lax.fori_loop(0, nsub, body, carry_ref[...], unroll=True)


def calc_returns(rewards_tm, dones_tm, gamma=GAMMA):
    """Discounted returns.  Inputs are time-major (num_steps, num_envs) f32."""
    r = jnp.asarray(rewards_tm, jnp.float32)
    d = jnp.asarray(dones_tm, jnp.float32)
    T, N = r.shape
    lane = _pick_lane_tile(N)
    time_blk = 16 if lane == 128 else 8
    t_chunk, t_pad = _time_tiling(T, time_blk)
    n_pad = _round_up(N, lane)
    nt_blocks = t_pad // t_chunk
    spec = pl.BlockSpec((t_chunk, lane), lambda j, k: (nt_blocks - 1 - k, j))
    out = pl.pallas_call(
        functools.partial(_returns_kernel, gamma=float(gamma), time_blk=time_blk),
        grid=(n_pad // lane, nt_blocks),
        in_specs=[spec, spec],
        out_specs=spec,
        out_shape=jax.ShapeDtypeStruct((t_pad, n_pad), jnp.float32),
        scratch_shapes=[pltpu.VMEM((1, lane), jnp.float32)],
        compiler_params=_compiler_params(),
    )(_pad2d(r, t_pad, n_pad), _pad2d(d, t_pad, n_pad))
    return _maybe_crop(out, T, N)


def calc_returns_env_major(rewards, dones, gamma=GAMMA):
    """PyTorch-layout shim: inputs/outputs are (num_envs, num_steps).
    Pays two input transposes + one output transpose; prefer the time-major
    entry point when the caller can provide it."""
    r = jnp.asarray(rewards, jnp.float32)
    d = jnp.asarray(dones, jnp.float32)
    return calc_returns(r.T, d.T, gamma).T


# ----------------------------------------------------------------------------
# Kernel 2: GAE + bootstrapped targets (Agent.compute_gae_and_targets)
#   delta        = r[t] + gamma * V'(s_t) * (1 - term[t]) - V(s_t)
#   last_gae_lam = delta + gamma * lambda * (1 - term[t]) * last_gae_lam
#   adv[t]       = last_gae_lam * (1 - term[t])   (matches the PyTorch source)
#   targets      = values + adv
# ----------------------------------------------------------------------------
def _gae_kernel(r_ref, term_ref, v_ref, nv_ref, tgt_ref, adv_ref, carry_ref, *,
                gamma, lam, time_blk):
    @pl.when(pl.program_id(1) == 0)
    def _init():
        carry_ref[...] = jnp.zeros_like(carry_ref)

    t_chunk, _ = r_ref.shape
    nsub = t_chunk // time_blk
    glam_c = gamma * lam

    def body(i, last_gae):
        b = nsub - 1 - i
        t0 = pl.multiple_of(b * time_blk, time_blk)
        nt = 1.0 - term_ref[pl.ds(t0, time_blk), :]
        v_blk = v_ref[pl.ds(t0, time_blk), :]
        # Hoisted carry-independent block math (full vregs).
        delta = (r_ref[pl.ds(t0, time_blk), :]
                 + gamma * nv_ref[pl.ds(t0, time_blk), :] * nt - v_blk)
        glam = glam_c * nt
        adv_rows = [None] * time_blk
        for s in range(time_blk - 1, -1, -1):
            last_gae = delta[s:s + 1, :] + glam[s:s + 1, :] * last_gae
            adv_rows[s] = last_gae * nt[s:s + 1, :]          # off the chain
        adv_blk = jnp.concatenate(adv_rows, axis=0)
        adv_ref[pl.ds(t0, time_blk), :] = adv_blk
        tgt_ref[pl.ds(t0, time_blk), :] = v_blk + adv_blk
        return last_gae

    carry_ref[...] = lax.fori_loop(0, nsub, body, carry_ref[...], unroll=True)


def compute_gae_and_targets(rewards, terminals, values, next_values,
                            gamma=GAMMA, lam=LAMBDA):
    """All inputs time-major (num_steps, num_envs) f32.  Returns (targets, advantages)."""
    r = jnp.asarray(rewards, jnp.float32)
    t = jnp.asarray(terminals, jnp.float32)
    v = jnp.asarray(values, jnp.float32)
    nv = jnp.asarray(next_values, jnp.float32)
    T, N = r.shape
    lane = _pick_lane_tile(N)
    time_blk = 16 if lane == 128 else 8
    t_chunk, t_pad = _time_tiling(T, time_blk)
    n_pad = _round_up(N, lane)
    nt_blocks = t_pad // t_chunk
    spec = pl.BlockSpec((t_chunk, lane), lambda j, k: (nt_blocks - 1 - k, j))
    padded = [_pad2d(x, t_pad, n_pad) for x in (r, t, v, nv)]
    targets, advantages = pl.pallas_call(
        functools.partial(_gae_kernel, gamma=float(gamma), lam=float(lam),
                          time_blk=time_blk),
        grid=(n_pad // lane, nt_blocks),
        in_specs=[spec] * 4,
        out_specs=(spec, spec),
        out_shape=(jax.ShapeDtypeStruct((t_pad, n_pad), jnp.float32),
                   jax.ShapeDtypeStruct((t_pad, n_pad), jnp.float32)),
        scratch_shapes=[pltpu.VMEM((1, lane), jnp.float32)],
        compiler_params=_compiler_params(),
    )(*padded)
    return _maybe_crop(targets, T, N), _maybe_crop(advantages, T, N)


# ----------------------------------------------------------------------------
# Kernel 2b: fused returns + GAE (single backward pass over the rollout).
# Uses `terminals` as the done mask for the returns recursion; avoids reading
# rewards/terminals from HBM twice and pays pipeline fill/drain only once.
# ----------------------------------------------------------------------------
def _fused_kernel(r_ref, term_ref, v_ref, nv_ref,
                  ret_ref, tgt_ref, adv_ref, ret_c_ref, gae_c_ref, *,
                  gamma, lam, time_blk):
    @pl.when(pl.program_id(1) == 0)
    def _init():
        ret_c_ref[...] = jnp.zeros_like(ret_c_ref)
        gae_c_ref[...] = jnp.zeros_like(gae_c_ref)

    t_chunk, _ = r_ref.shape
    nsub = t_chunk // time_blk
    glam_c = gamma * lam

    def body(i, carry):
        running, last_gae = carry
        b = nsub - 1 - i
        t0 = pl.multiple_of(b * time_blk, time_blk)
        r_blk = r_ref[pl.ds(t0, time_blk), :]
        nt = 1.0 - term_ref[pl.ds(t0, time_blk), :]
        v_blk = v_ref[pl.ds(t0, time_blk), :]
        # Hoisted carry-independent block math (full vregs).
        coef = gamma * nt
        delta = r_blk + gamma * nv_ref[pl.ds(t0, time_blk), :] * nt - v_blk
        glam = glam_c * nt
        ret_rows = [None] * time_blk
        adv_rows = [None] * time_blk
        for s in range(time_blk - 1, -1, -1):
            running = r_blk[s:s + 1, :] + coef[s:s + 1, :] * running
            ret_rows[s] = running
            last_gae = delta[s:s + 1, :] + glam[s:s + 1, :] * last_gae
            adv_rows[s] = last_gae * nt[s:s + 1, :]
        adv_blk = jnp.concatenate(adv_rows, axis=0)
        ret_ref[pl.ds(t0, time_blk), :] = jnp.concatenate(ret_rows, axis=0)
        adv_ref[pl.ds(t0, time_blk), :] = adv_blk
        tgt_ref[pl.ds(t0, time_blk), :] = v_blk + adv_blk
        return running, last_gae

    running, last_gae = lax.fori_loop(
        0, nsub, body, (ret_c_ref[...], gae_c_ref[...]), unroll=True)
    ret_c_ref[...] = running
    gae_c_ref[...] = last_gae


def compute_returns_gae_and_targets(rewards, terminals, values, next_values,
                                    gamma=GAMMA, lam=LAMBDA):
    """Fused: returns, targets, advantages in one pass.  Time-major inputs."""
    r = jnp.asarray(rewards, jnp.float32)
    t = jnp.asarray(terminals, jnp.float32)
    v = jnp.asarray(values, jnp.float32)
    nv = jnp.asarray(next_values, jnp.float32)
    T, N = r.shape
    lane = _pick_lane_tile(N)
    time_blk = 8          # 2 carries + 3 output row-sets -> keep vreg pressure low
    t_chunk, t_pad = _time_tiling(T, time_blk)
    n_pad = _round_up(N, lane)
    nt_blocks = t_pad // t_chunk
    spec = pl.BlockSpec((t_chunk, lane), lambda j, k: (nt_blocks - 1 - k, j))
    padded = [_pad2d(x, t_pad, n_pad) for x in (r, t, v, nv)]
    rets, targets, advantages = pl.pallas_call(
        functools.partial(_fused_kernel, gamma=float(gamma), lam=float(lam),
                          time_blk=time_blk),
        grid=(n_pad // lane, nt_blocks),
        in_specs=[spec] * 4,
        out_specs=(spec, spec, spec),
        out_shape=(jax.ShapeDtypeStruct((t_pad, n_pad), jnp.float32),
                   jax.ShapeDtypeStruct((t_pad, n_pad), jnp.float32),
                   jax.ShapeDtypeStruct((t_pad, n_pad), jnp.float32)),
        scratch_shapes=[pltpu.VMEM((1, lane), jnp.float32),
                        pltpu.VMEM((1, lane), jnp.float32)],
        compiler_params=_compiler_params(),
    )(*padded)
    return (_maybe_crop(rets, T, N), _maybe_crop(targets, T, N),
            _maybe_crop(advantages, T, N))


# ----------------------------------------------------------------------------
# Kernel 3: action rescale (Agent.rescaleAction)
#   out = min + 0.5 * (a + 1) * (max - min)
# ----------------------------------------------------------------------------
def _rescale_kernel(a_ref, out_ref, *, lo, hi):
    out_ref[...] = lo + 0.5 * (a_ref[...] + 1.0) * (hi - lo)


def rescale_action(action, lo, hi):
    """Affine rescale [-1,1] -> [lo,hi].  Small tensors fall back to plain jnp
    (launch overhead dominates; XLA fuses the FMA into its consumer); larger
    ones use a lane-dense Pallas kernel with ~1 MiB blocks."""
    a = jnp.asarray(action, jnp.float32)
    L = int(a.size)
    if L < _RESCALE_PALLAS_MIN:
        return lo + 0.5 * (a + 1.0) * (hi - lo)

    orig_shape = a.shape
    flat = a.reshape(-1)
    LANE = 1024
    nrows = _round_up(L, LANE) // LANE
    row_blk = min(_round_up(nrows, 8), 256)        # up to 1 MiB per block
    nrows_pad = _round_up(nrows, row_blk)
    L_pad = nrows_pad * LANE
    if L_pad != L:
        flat = jnp.pad(flat, (0, L_pad - L))
    x2 = flat.reshape(nrows_pad, LANE)

    spec = pl.BlockSpec((row_blk, LANE), lambda i: (i, 0))
    out = pl.pallas_call(
        functools.partial(_rescale_kernel, lo=float(lo), hi=float(hi)),
        grid=(nrows_pad // row_blk,),
        in_specs=[spec],
        out_specs=spec,
        out_shape=jax.ShapeDtypeStruct((nrows_pad, LANE), jnp.float32),
        compiler_params=pltpu.CompilerParams(dimension_semantics=("parallel",)),
    )(x2)
    return out.reshape(-1)[:L].reshape(orig_shape)


# ----------------------------------------------------------------------------
# Pure-numpy references for verification
# ----------------------------------------------------------------------------
def _ref_calc_returns_tm(rewards, dones, gamma):
    r = np.asarray(rewards)
    d = np.asarray(dones)
    out = np.zeros_like(r)
    running = np.zeros_like(r[0])
    for t in range(r.shape[0] - 1, -1, -1):
        running = r[t] + (1.0 - d[t]) * gamma * running
        out[t] = running
    return out


def _ref_gae(rewards, terminals, values, next_values, gamma, lam):
    r = np.asarray(rewards)
    term = np.asarray(terminals)
    v = np.asarray(values)
    nv = np.asarray(next_values)
    adv = np.zeros_like(r)
    last_gae = np.zeros_like(r[0])
    for t in range(r.shape[0] - 1, -1, -1):
        non_term = 1.0 - term[t]
        delta = r[t] + gamma * nv[t] * non_term - v[t]
        last_gae = delta + gamma * lam * non_term * last_gae
        adv[t] = last_gae * non_term
    return v + adv, adv


def _check_rollout_case(key, T, N):
    k1, k2, k3, k4, k5 = jax.random.split(key, 5)
    rewards = jax.random.normal(k1, (T, N), jnp.float32)
    dones = (jax.random.uniform(k2, (T, N)) < 0.2).astype(jnp.float32)
    terminals = (jax.random.uniform(k3, (T, N)) < 0.2).astype(jnp.float32)
    values = jax.random.normal(k4, (T, N), jnp.float32)
    next_values = jax.random.normal(k5, (T, N), jnp.float32)

    rets = jax.block_until_ready(calc_returns(rewards, dones))
    rets_env = jax.block_until_ready(calc_returns_env_major(rewards.T, dones.T))
    targets, advantages = jax.block_until_ready(
        compute_gae_and_targets(rewards, terminals, values, next_values))
    f_rets, f_targets, f_adv = jax.block_until_ready(
        compute_returns_gae_and_targets(rewards, terminals, values, next_values))

    rets_ref = _ref_calc_returns_tm(rewards, dones, GAMMA)
    rets_term_ref = _ref_calc_returns_tm(rewards, terminals, GAMMA)
    tgt_ref, adv_ref = _ref_gae(rewards, terminals, values, next_values,
                                GAMMA, LAMBDA)

    tag = f"(T={T}, N={N})"
    assert np.allclose(rets, rets_ref, atol=1e-4), f"calc_returns mismatch {tag}"
    assert np.allclose(rets_env, rets_ref.T, atol=1e-4), f"env_major mismatch {tag}"
    assert np.allclose(targets, tgt_ref, atol=1e-4), f"targets mismatch {tag}"
    assert np.allclose(advantages, adv_ref, atol=1e-4), f"advantages mismatch {tag}"
    assert np.allclose(f_rets, rets_term_ref, atol=1e-4), f"fused returns mismatch {tag}"
    assert np.allclose(f_targets, tgt_ref, atol=1e-4), f"fused targets mismatch {tag}"
    assert np.allclose(f_adv, adv_ref, atol=1e-4), f"fused advantages mismatch {tag}"


if __name__ == "__main__":
    key = jax.random.PRNGKey(0)
    k_small, k_big, k_act_s, k_act_l = jax.random.split(key, 4)

    # Case A: small, deliberately non-aligned (T=12 steps, N=20 envs):
    # single time chunk, single env tile, exercises the padding paths.
    _check_rollout_case(k_small, T=12, N=20)

    # Case B: T=100 steps, N=200 envs: 2 reversed time chunks x 2 env tiles,
    # exercises the VMEM-scratch carry across time-grid steps and the
    # parallel env axis.
    _check_rollout_case(k_big, T=100, N=200)

    # Action rescale: small tensor takes the fused-jnp fallback, the larger
    # one the Pallas kernel path.
    act_small = jnp.tanh(jax.random.normal(k_act_s, (20, 6), jnp.float32))
    act_large = jnp.tanh(jax.random.normal(k_act_l, (1024, 16), jnp.float32))
    for act in (act_small, act_large):
        scaled = jax.block_until_ready(rescale_action(act, -2.0, 2.0))
        ref = -2.0 + 0.5 * (np.asarray(act) + 1.0) * (2.0 - (-2.0))
        assert np.allclose(scaled, ref, atol=1e-6), "rescale mismatch"

    print("KERNEL_OK")
</pallas_src>

<mosaic_0001>
module attributes {stable_mosaic.version = 11 : i64} {
  func.func @_returns_kernel(%arg0: i32, %arg1: i32, %arg2: memref<16x128xf32, #tpu.memory_space<vmem>>, %arg3: memref<16x128xf32, #tpu.memory_space<vmem>>, %arg4: memref<16x128xf32, #tpu.memory_space<vmem>>, %arg5: memref<1x128xf32, #tpu.memory_space<vmem>>) attributes {dimension_semantics = [#tpu.dimension_semantics<parallel>, #tpu.dimension_semantics<arbitrary>], iteration_bounds = array<i64: 1, 1>, scalar_prefetch = 0 : i64, scratch_operands = 1 : i64, tpu.core_type = #tpu.core_type<tc>, window_params = [{transform_indices = @transform_0, window_bounds = array<i64: 16, 128>}, {transform_indices = @transform_1, window_bounds = array<i64: 16, 128>}, {transform_indices = @transform_2, window_bounds = array<i64: 16, 128>}]} {
    %c0_i32 = arith.constant 0 : i32
    %0 = arith.cmpi eq, %arg1, %c0_i32 : i32
    %1 = arith.extui %0 : i1 to i32
    %c0_i32_0 = arith.constant 0 : i32
    %2 = arith.cmpi ne, %1, %c0_i32_0 : i32
    scf.if %2 {
      %cst_10 = arith.constant 0.000000e+00 : f32
      %83 = vector.broadcast %cst_10 : f32 to vector<1x128xf32>
      %c0_11 = arith.constant 0 : index
      %c0_12 = arith.constant 0 : index
      %84 = vector.load %arg5[%c0_11, %c0_12] : memref<1x128xf32, #tpu.memory_space<vmem>>, vector<1x128xf32>
      tpu.vector_store %arg5[%c0_11, %c0_12], %83 {strides = array<i32>} : memref<1x128xf32, #tpu.memory_space<vmem>>, vector<1x128xf32>,
    } else {
    }
    %c0 = arith.constant 0 : index
    %c0_1 = arith.constant 0 : index
    %3 = vector.load %arg5[%c0, %c0_1] : memref<1x128xf32, #tpu.memory_space<vmem>>, vector<1x128xf32>
    %c0_i32_2 = arith.constant 0 : i32
    %c0_i32_3 = arith.constant 0 : i32
    %4 = arith.subi %c0_i32_3, %c0_i32_2 : i32
    %c16_i32 = arith.constant 16 : i32
    %5 = arith.muli %4, %c16_i32 : i32
    %6 = tpu.assume_multiple %5, 16 : i32
    %7 = arith.index_cast %6 : i32 to index
    %c0_4 = arith.constant 0 : index
    %8 = vector.load %arg2[%7, %c0_4] : memref<16x128xf32, #tpu.memory_space<vmem>>, vector<16x128xf32>
    %9 = arith.index_cast %6 : i32 to index
    %c0_5 = arith.constant 0 : index
    %10 = vector.load %arg3[%9, %c0_5] : memref<16x128xf32, #tpu.memory_space<vmem>>, vector<16x128xf32>
    %cst = arith.constant 1.000000e+00 : f32
    %11 = vector.broadcast %cst : f32 to vector<16x128xf32>
    %12 = arith.subf %11, %10 : vector<16x128xf32>
    %cst_6 = arith.constant 9.900000e-01 : f32
    %13 = vector.broadcast %cst_6 : f32 to vector<16x128xf32>
    %14 = arith.mulf %13, %12 : vector<16x128xf32>
    %15 = vector.extract_strided_slice %8 {offsets = [15, 0], sizes = [1, 128], strides = [1, 1]} : vector<16x128xf32> to vector<1x128xf32>
    %16 = vector.extract_strided_slice %14 {offsets = [15, 0], sizes = [1, 128], strides = [1, 1]} : vector<16x128xf32> to vector<1x128xf32>
    %17 = arith.mulf %16, %3 : vector<1x128xf32>
    %18 = arith.addf %15, %17 : vector<1x128xf32>
    %19 = vector.extract_strided_slice %8 {offsets = [14, 0], sizes = [1, 128], strides = [1, 1]} : vector<16x128xf32> to vector<1x128xf32>
    %20 = vector.extract_strided_slice %14 {offsets = [14, 0], sizes = [1, 128], strides = [1, 1]} : vector<16x128xf32> to vector<1x128xf32>
    %21 = arith.mulf %20, %18 : vector<1x128xf32>
    %22 = arith.addf %19, %21 : vector<1x128xf32>
    %23 = vector.extract_strided_slice %8 {offsets = [13, 0], sizes = [1, 128], strides = [1, 1]} : vector<16x128xf32> to vector<1x128xf32>
    %24 = vector.extract_strided_slice %14 {offsets = [13, 0], sizes = [1, 128], strides = [1, 1]} : vector<16x128xf32> to vector<1x128xf32>
    %25 = arith.mulf %24, %22 : vector<1x128xf32>
    %26 = arith.addf %23, %25 : vector<1x128xf32>
    %27 = vector.extract_strided_slice %8 {offsets = [12, 0], sizes = [1, 128], strides = [1, 1]} : vector<16x128xf32> to vector<1x128xf32>
    %28 = vector.extract_strided_slice %14 {offsets = [12, 0], sizes = [1, 128], strides = [1, 1]} : vector<16x128xf32> to vector<1x128xf32>
    %29 = arith.mulf %28, %26 : vector<1x128xf32>
    %30 = arith.addf %27, %29 : vector<1x128xf32>
    %31 = vector.extract_strided_slice %8 {offsets = [11, 0], sizes = [1, 128], strides = [1, 1]} : vector<16x128xf32> to vector<1x128xf32>
    %32 = vector.extract_strided_slice %14 {offsets = [11, 0], sizes = [1, 128], strides = [1, 1]} : vector<16x128xf32> to vector<1x128xf32>
    %33 = arith.mulf %32, %30 : vector<1x128xf32>
    %34 = arith.addf %31, %33 : vector<1x128xf32>
    %35 = vector.extract_strided_slice %8 {offsets = [10, 0], sizes = [1, 128], strides = [1, 1]} : vector<16x128xf32> to vector<1x128xf32>
    %36 = vector.extract_strided_slice %14 {offsets = [10, 0], sizes = [1, 128], strides = [1, 1]} : vector<16x128xf32> to vector<1x128xf32>
    %37 = arith.mulf %36, %34 : vector<1x128xf32>
    %38 = arith.addf %35, %37 : vector<1x128xf32>
    %39 = vector.extract_strided_slice %8 {offsets = [9, 0], sizes = [1, 128], strides = [1, 1]} : vector<16x128xf32> to vector<1x128xf32>
    %40 = vector.extract_strided_slice %14 {offsets = [9, 0], sizes = [1, 128], strides = [1, 1]} : vector<16x128xf32> to vector<1x128xf32>
    %41 = arith.mulf %40, %38 : vector<1x128xf32>
    %42 = arith.addf %39, %41 : vector<1x128xf32>
    %43 = vector.extract_strided_slice %8 {offsets = [8, 0], sizes = [1, 128], strides = [1, 1]} : vector<16x128xf32> to vector<1x128xf32>
    %44 = vector.extract_strided_slice %14 {offsets = [8, 0], sizes = [1, 128], strides = [1, 1]} : vector<16x128xf32> to vector<1x128xf32>
    %45 = arith.mulf %44, %42 : vector<1x128xf32>
    %46 = arith.addf %43, %45 : vector<1x128xf32>
    %47 = vector.extract_strided_slice %8 {offsets = [7, 0], sizes = [1, 128], strides = [1, 1]} : vector<16x128xf32> to vector<1x128xf32>
    %48 = vector.extract_strided_slice %14 {offsets = [7, 0], sizes = [1, 128], strides = [1, 1]} : vector<16x128xf32> to vector<1x128xf32>
    %49 = arith.mulf %48, %46 : vector<1x128xf32>
    %50 = arith.addf %47, %49 : vector<1x128xf32>
    %51 = vector.extract_strided_slice %8 {offsets = [6, 0], sizes = [1, 128], strides = [1, 1]} : vector<16x128xf32> to vector<1x128xf32>
    %52 = vector.extract_strided_slice %14 {offsets = [6, 0], sizes = [1, 128], strides = [1, 1]} : vector<16x128xf32> to vector<1x128xf32>
    %53 = arith.mulf %52, %50 : vector<1x128xf32>
    %54 = arith.addf %51, %53 : vector<1x128xf32>
    %55 = vector.extract_strided_slice %8 {offsets = [5, 0], sizes = [1, 128], strides = [1, 1]} : vector<16x128xf32> to vector<1x128xf32>
    %56 = vector.extract_strided_slice %14 {offsets = [5, 0], sizes = [1, 128], strides = [1, 1]} : vector<16x128xf32> to vector<1x128xf32>
    %57 = arith.mulf %56, %54 : vector<1x128xf32>
    %58 = arith.addf %55, %57 : vector<1x128xf32>
    %59 = vector.extract_strided_slice %8 {offsets = [4, 0], sizes = [1, 128], strides = [1, 1]} : vector<16x128xf32> to vector<1x128xf32>
    %60 = vector.extract_strided_slice %14 {offsets = [4, 0], sizes = [1, 128], strides = [1, 1]} : vector<16x128xf32> to vector<1x128xf32>
    %61 = arith.mulf %60, %58 : vector<1x128xf32>
    %62 = arith.addf %59, %61 : vector<1x128xf32>
    %63 = vector.extract_strided_slice %8 {offsets = [3, 0], sizes = [1, 128], strides = [1, 1]} : vector<16x128xf32> to vector<1x128xf32>
    %64 = vector.extract_strided_slice %14 {offsets = [3, 0], sizes = [1, 128], strides = [1, 1]} : vector<16x128xf32> to vector<1x128xf32>
    %65 = arith.mulf %64, %62 : vector<1x128xf32>
    %66 = arith.addf %63, %65 : vector<1x128xf32>
    %67 = vector.extract_strided_slice %8 {offsets = [2, 0], sizes = [1, 128], strides = [1, 1]} : vector<16x128xf32> to vector<1x128xf32>
    %68 = vector.extract_strided_slice %14 {offsets = [2, 0], sizes = [1, 128], strides = [1, 1]} : vector<16x128xf32> to vector<1x128xf32>
    %69 = arith.mulf %68, %66 : vector<1x128xf32>
    %70 = arith.addf %67, %69 : vector<1x128xf32>
    %71 = vector.extract_strided_slice %8 {offsets = [1, 0], sizes = [1, 128], strides = [1, 1]} : vector<16x128xf32> to vector<1x128xf32>
    %72 = vector.extract_strided_slice %14 {offsets = [1, 0], sizes = [1, 128], strides = [1, 1]} : vector<16x128xf32> to vector<1x128xf32>
    %73 = arith.mulf %72, %70 : vector<1x128xf32>
    %74 = arith.addf %71, %73 : vector<1x128xf32>
    %75 = vector.extract_strided_slice %8 {offsets = [0, 0], sizes = [1, 128], strides = [1, 1]} : vector<16x128xf32> to vector<1x128xf32>
    %76 = vector.extract_strided_slice %14 {offsets = [0, 0], sizes = [1, 128], strides = [1, 1]} : vector<16x128xf32> to vector<1x128xf32>
    %77 = arith.mulf %76, %74 : vector<1x128xf32>
    %78 = arith.addf %75, %77 : vector<1x128xf32>
    %79 = tpu.concatenate %78, %74, %70, %66, %62, %58, %54, %50, %46, %42, %38, %34, %30, %26, %22, %18 in 0 : vector<1x128xf32>, vector<1x128xf32>, vector<1x128xf32>, vector<1x128xf32>, vector<1x128xf32>, vector<1x128xf32>, vector<1x128xf32>, vector<1x128xf32>, vector<1x128xf32>, vector<1x128xf32>, vector<1x128xf32>, vector<1x128xf32>, vector<1x128xf32>, vector<1x128xf32>, vector<1x128xf32>, vector<1x128xf32> -> vector<16x128xf32>
    %80 = arith.index_cast %6 : i32 to index
    %c0_7 = arith.constant 0 : index
    %81 = vector.load %arg4[%80, %c0_7] : memref<16x128xf32, #tpu.memory_space<vmem>>, vector<16x128xf32>
    tpu.vector_store %arg4[%80, %c0_7], %79 {strides = array<i32>} : memref<16x128xf32, #tpu.memory_space<vmem>>, vector<16x128xf32>,
    %c1_i32 = arith.constant 1 : i32
    %c0_8 = arith.constant 0 : index
    %c0_9 = arith.constant 0 : index
    %82 = vector.load %arg5[%c0_8, %c0_9] : memref<1x128xf32, #tpu.memory_space<vmem>>, vector<1x128xf32>
    tpu.vector_store %arg5[%c0_8, %c0_9], %78 {strides = array<i32>} : memref<1x128xf32, #tpu.memory_space<vmem>>, vector<1x128xf32>,
    return
  }
  func.func @transform_0(%arg0: i32, %arg1: i32) -> (i32, i32) {
    %c0_i32 = arith.constant 0 : i32
    %0 = arith.subi %c0_i32, %arg1 : i32
    %c0_i32_0 = arith.constant 0 : i32
    return %0, %arg0 : i32, i32
  }
  func.func @transform_1(%arg0: i32, %arg1: i32) -> (i32, i32) {
    %c0_i32 = arith.constant 0 : i32
    %0 = arith.subi %c0_i32, %arg1 : i32
    %c0_i32_0 = arith.constant 0 : i32
    return %0, %arg0 : i32, i32
  }
  func.func @transform_2(%arg0: i32, %arg1: i32) -> (i32, i32) {
    %c0_i32 = arith.constant 0 : i32
    %0 = arith.subi %c0_i32, %arg1 : i32
    %c0_i32_0 = arith.constant 0 : i32
    return %0, %arg0 : i32, i32
  }
}

</mosaic_0001>

<llo_original>
// kernel: tpu_custom_call.1
$region0: #{tpu_custom_call.1}
  #allocation0 [shape = 'u32[]', space=smem, size = 0x4, offset = 0x4, fixed_abs, tag = 'smem constant byte address 0x4 - core index']
  #allocation1 [shape = 'u32[144,128]{1,0:T(1,128)}', space=vmem, size = 0x12000, scoped, tag = 'internal scratch']
  #allocation2 [shape = 'f32[1,128]{1,0:T(1,128)}', space=vmem, size = 0x200, scoped, tag = 'scratch operand']
  %s0 = inlined_call_operand.hbm [shape: f32[16,128], index: 0, kind: input, shape index: {}]
  %s1 = inlined_call_operand.hbm [shape: f32[16,128], index: 1, kind: input, shape index: {}]
  %s2 = inlined_call_operand.hbm [shape: f32[16,128], index: 2, kind: output, shape index: {}]
  %s3 = sld [smem:[#allocation0]]
  $region30: #{tpu_custom_call.1} parent=0
    _
  %s5 = ssub.s32 1, %s3
  %s6 = scalar_select 0, %s5, %s3
  $region1: #{tpu_custom_call.1} parent=0
    #allocation3 [shape = 'u8[8192]{0}', space=vmem, size = 0x2000, scoped, tag = 'input window, operand 0, single buffered']
    #allocation4 [shape = 's32[1]{0}', space=sflag, size = 0x4, scoped, tag = 'scoped memory for tpu_custom_call.1']
    #allocation5 [shape = 's32[1]{0}', space=sflag, size = 0x4, scoped, tag = 'scoped memory for tpu_custom_call.1']
    #allocation6 [shape = 'u8[8192]{0}', space=vmem, size = 0x2000, scoped, tag = 'input window, operand 1, single buffered']
    #allocation7 [shape = 's32[1]{0}', space=sflag, size = 0x4, scoped, tag = 'scoped memory for tpu_custom_call.1']
    #allocation8 [shape = 'u8[8192]{0}', space=vmem, size = 0x2000, scoped, tag = 'output window, operand 0, single buffered']
    %7 = vsyncpa [#allocation4], 0
    %8 = vsyncpa [#allocation7], 0
    %9 = vsyncpa [#allocation5], 0
    // Predicated region
    $region2: #{tpu_custom_call.1} parent=1 // pred_check
      _
    $region3: #{tpu_custom_call.1} parent=1 // pred_check_branch
      %11 = sbr.rel (0) target = $region5
    $region4: #{tpu_custom_call.1} parent=1 // pred_region
      %s12 = ssub.s32 0, 0
      %s13 = smul.u32 2, %s12
      %s15 = ssub.s32 256, 256
      %16 = vsyncadd [#allocation4], %s15
      %s17 = smul.addr %s13, 128
      %s18 = scalar_lea.hbm %s0, %s17
      %s19 = sshll.u32 [#allocation3], 4
      %s20 = int_to_ptr.vmem [resolvable:$true] %s19
      %25 = dma.hbm_to_vmem [thread:$0]  %s18, 256, %s20, [#allocation4], 128, 128, 8
    $region5: #{tpu_custom_call.1} parent=1 // pred_fallthru
      _
    // Predicated region
    $region6: #{tpu_custom_call.1} parent=1 // pred_check
      _
    $region7: #{tpu_custom_call.1} parent=1 // pred_check_branch
      %27 = sbr.rel (0) target = $region9
    $region8: #{tpu_custom_call.1} parent=1 // pred_region
      %s28 = ssub.s32 0, 0
      %s29 = smul.u32 2, %s28
      %s31 = ssub.s32 256, 256
      %32 = vsyncadd [#allocation7], %s31
      %s33 = smul.addr %s29, 128
      %s34 = scalar_lea.hbm %s1, %s33
      %s35 = sshll.u32 [#allocation6], 4
      %s36 = int_to_ptr.vmem [resolvable:$true] %s35
      %41 = dma.hbm_to_vmem [thread:$0]  %s34, 256, %s36, [#allocation7], 128, 128, 8
    $region9: #{tpu_custom_call.1} parent=1 // pred_fallthru
      _
    // Predicated region
    $region10: #{tpu_custom_call.1} parent=1 // pred_check
      _
    $region11: #{tpu_custom_call.1} parent=1 // pred_check_branch
      %43 = sbr.rel (0) target = $region13
    $region12: #{tpu_custom_call.1} parent=1 // pred_region
      %44 = dma.done [#allocation4], 256
    $region13: #{tpu_custom_call.1} parent=1 // pred_fallthru
      _
    // Predicated region
    $region14: #{tpu_custom_call.1} parent=1 // pred_check
      _
    $region15: #{tpu_custom_call.1} parent=1 // pred_check_branch
      %46 = sbr.rel (0) target = $region17
    $region16: #{tpu_custom_call.1} parent=1 // pred_region
      %47 = dma.done [#allocation7], 256
    $region17: #{tpu_custom_call.1} parent=1 // pred_fallthru
      _
    %s48 = ssub.s32 0, 0
    %s49 = smul.u32 2, %s48
    %s50 = ssub.s32 0, 0
    %s51 = smul.u32 2, %s50
    %s52 = ssub.s32 0, 0
    %s53 = smul.u32 2, %s52
    %p54 = scmp.eq.s32.totalorder 0, 0
    // Predicated region
    $region18: #{tpu_custom_call.1} parent=1 // pred_check
      %p55 = pneg %p54
    $region19: #{tpu_custom_call.1} parent=1 // pred_check_branch
      %57 = sbr.rel (%p55) target = $region21
    $region20: #{tpu_custom_call.1} parent=1 // pred_region
      %58 = vst [vmem:[#allocation2] sm:$0x1] 0.0
    $region21: #{tpu_custom_call.1} parent=1 // pred_fallthru
      _
    %v59 = vld [vmem:[#allocation2] sm:$0x1]
    %v60 = vld [vmem:[#allocation3] sm:$0xff]
    %v61 = vld [vmem:[#allocation3 + $0x8] sm:$0xff]
    %v62 = vld [vmem:[#allocation6] sm:$0xff]
    %v63 = vld [vmem:[#allocation6 + $0x8] sm:$0xff]
    %v64 = vsub.f32 1.0, %v62
    %v65 = vsub.f32 1.0, %v63
    %v66 = vmul.f32 %v64, 0.99
    %v67 = vmul.f32 %v65, 0.99
    %v69 = vlaneseq
    %v70 = vshrl.u32 %v69, 7
    %v71 = vsub.s32 0, %v70
    %v72 = vrot.slane %v59, %v71
    %v74 = vmul.f32 %v67, %v72
    %v75 = vadd.f32 %v61, %v74
    %v77 = vrot.slane %v75, 1
    %v79 = vmul.f32 %v67, %v77
    %v80 = vadd.f32 %v61, %v79
    %v82 = vrot.slane %v80, 1
    %v84 = vmul.f32 %v67, %v82
    %v85 = vadd.f32 %v61, %v84
    %v87 = vrot.slane %v85, 1
    %v89 = vmul.f32 %v67, %v87
    %v90 = vadd.f32 %v61, %v89
    %v92 = vrot.slane %v90, 1
    %v94 = vmul.f32 %v67, %v92
    %v95 = vadd.f32 %v61, %v94
    %v97 = vrot.slane %v95, 1
    %v99 = vmul.f32 %v67, %v97
    %v100 = vadd.f32 %v61, %v99
    %v102 = vrot.slane %v100, 1
    %v104 = vmul.f32 %v67, %v102
    %v105 = vadd.f32 %v61, %v104
    %v107 = vrot.slane %v105, 1
    %v109 = vmul.f32 %v67, %v107
    %v110 = vadd.f32 %v61, %v109
    %v112 = vrot.slane %v110, 1
    %v114 = vmul.f32 %v66, %v112
    %v115 = vadd.f32 %v60, %v114
    %v117 = vrot.slane %v115, 1
    %v119 = vmul.f32 %v66, %v117
    %v120 = vadd.f32 %v60, %v119
    %v122 = vrot.slane %v120, 1
    %v124 = vmul.f32 %v66, %v122
    %v125 = vadd.f32 %v60, %v124
    %v127 = vrot.slane %v125, 1
    %v129 = vmul.f32 %v66, %v127
    %v130 = vadd.f32 %v60, %v129
    %v132 = vrot.slane %v130, 1
    %v134 = vmul.f32 %v66, %v132
    %v135 = vadd.f32 %v60, %v134
    %v137 = vrot.slane %v135, 1
    %v139 = vmul.f32 %v66, %v137
    %v140 = vadd.f32 %v60, %v139
    %v142 = vrot.slane %v140, 1
    %v144 = vmul.f32 %v66, %v142
    %v145 = vadd.f32 %v60, %v144
    %v147 = vrot.slane %v145, 1
    %v149 = vmul.f32 %v66, %v147
    %v150 = vadd.f32 %v60, %v149
    %vm151 = vcmask 1040384
    %v152 = vsel %vm151, %v150, %v145
    %vm153 = vcmask 1041408
    %v154 = vsel %vm153, %v152, %v140
    %vm155 = vcmask 1042432
    %v156 = vsel %vm155, %v154, %v135
    %vm157 = vcmask 1043456
    %v158 = vsel %vm157, %v156, %v130
    %vm159 = vcmask 1044480
    %v160 = vsel %vm159, %v158, %v125
    %vm161 = vcmask 1045504
    %v162 = vsel %vm161, %v160, %v120
    %vm163 = vcmask 1046528
    %v164 = vsel %vm163, %v162, %v115
    %v165 = vsel %vm151, %v110, %v105
    %v166 = vsel %vm153, %v165, %v100
    %v167 = vsel %vm155, %v166, %v95
    %v168 = vsel %vm157, %v167, %v90
    %v169 = vsel %vm159, %v168, %v85
    %v170 = vsel %vm161, %v169, %v80
    %v171 = vsel %vm163, %v170, %v75
    %172 = vst [vmem:[#allocation8] sm:$0xff] %v164
    %173 = vst [vmem:[#allocation8 + $0x8] sm:$0xff] %v171
    %174 = vst [vmem:[#allocation2] sm:$0x1] %v150
    // Predicated region
    $region22: #{tpu_custom_call.1} parent=1 // pred_check
      _
    $region23: #{tpu_custom_call.1} parent=1 // pred_check_branch
      %176 = sbr.rel (0) target = $region25
    $region24: #{tpu_custom_call.1} parent=1 // pred_region
      %s177 = ssub.s32 0, 0
      %s178 = smul.u32 2, %s177
      %s180 = ssub.s32 256, 256
      %181 = vsyncadd [#allocation5], %s180
      %s182 = smul.addr %s178, 128
      %s183 = scalar_lea.hbm %s2, %s182
      %s184 = sshll.u32 [#allocation8], 4
      %s185 = int_to_ptr.vmem [resolvable:$true] %s184
      %190 = dma.vmem_to_hbm [thread:$0]  %s185, 256, %s183, [#allocation5], 128, 128, 8
    $region25: #{tpu_custom_call.1} parent=1 // pred_fallthru
      _
    // Predicated region
    $region26: #{tpu_custom_call.1} parent=1 // pred_check
      _
    $region27: #{tpu_custom_call.1} parent=1 // pred_check_branch
      %192 = sbr.rel (0) target = $region29
    $region28: #{tpu_custom_call.1} parent=1 // pred_region
      %193 = dma.done [#allocation5], 256
    $region29: #{tpu_custom_call.1} parent=1 // pred_fallthru
      _
    %194 = vsyncpa [#allocation4], 1
    %195 = vsyncpa [#allocation7], 1
    %196 = vsyncpa [#allocation5], 1

</llo_original>
